<compile_context>
chip_gen: v7x
topology: tpu7x:2x2x1
jax: 0.10.0
libtpu: 0.0.40
codegen_flags: <defaults>
</compile_context>

<pallas_src>
import functools

import jax
import jax.numpy as jnp
from jax.experimental import pallas as pl
from jax.experimental.pallas import tpu as pltpu

NEG_SLOPE = 0.01  # PyTorch LeakyReLU default negative_slope


def _leaky_relu(x):
    return jnp.where(x > 0, x, NEG_SLOPE * x)


def _round_up(x, m):
    return (x + m - 1) // m * m


# ---------------------------------------------------------------------------
# One-time weight preparation (hoisted out of the per-call forward).
# Zero padding is exact for Linear(no-bias) + LeakyReLU: padded rows/cols stay
# zero through every layer, and the kernel only stores the first d lanes.
# ---------------------------------------------------------------------------

def prepare_weights(w1, w2, w3, ws, dtype=jnp.bfloat16):
    """w1/w2/w3/ws: [D, D] in [in, out] layout. Returns (w1s, w2p, w3p)."""
    d = w1.shape[0]
    dp = _round_up(d, 128)                       # lane-dense intermediate width
    w1p = jnp.pad(w1, ((0, 0), (0, dp - d)))     # [d, dp]  (out-dim padded)
    wsp = jnp.pad(ws, ((0, 0), (0, dp - d)))     # [d, dp]
    # block.Linear1 and the shortcut share the same input -> one wide matmul.
    w1s = jnp.concatenate([w1p, wsp], axis=1).astype(dtype)          # [d, 2*dp]
    w2p = jnp.pad(w2, ((0, dp - d), (0, dp - d))).astype(dtype)      # [dp, dp]
    w3p = jnp.pad(w3, ((0, dp - d), (0, dp - d))).astype(dtype)      # [dp, dp]
    return w1s, w2p, w3p


# ---------------------------------------------------------------------------
# Fused Pallas kernel: one batch tile of FF_baseline
# ---------------------------------------------------------------------------

def _ff_fused_kernel(x_ref, w1s_ref, w2_ref, w3_ref, o_ref):
    """x_ref   : [tm, D]     input tile (cast to weight dtype in-kernel)
       w1s_ref : [D,  2*Dp]  concat(block.Linear1, shortcut) along the out dim
       w2_ref  : [Dp, Dp]
       w3_ref  : [Dp, Dp]
       o_ref   : [tm, D]     output tile (true feature width, masked store)
    """
    d = o_ref.shape[1]
    dp = w2_ref.shape[0]
    cdt = w1s_ref.dtype

    y = x_ref[...].astype(cdt)
    # First block Linear and the shortcut Linear share y -> one wide MXU matmul.
    h1s = jnp.dot(y, w1s_ref[...], preferred_element_type=jnp.float32)   # [tm, 2*Dp]
    h = _leaky_relu(h1s[:, :dp])             # lane-tile-aligned slice
    shortcut = h1s[:, dp:]

    h = _leaky_relu(
        jnp.dot(h.astype(cdt), w2_ref[...], preferred_element_type=jnp.float32))
    h = _leaky_relu(
        jnp.dot(h.astype(cdt), w3_ref[...], preferred_element_type=jnp.float32))

    out = h + shortcut                                                    # [tm, Dp]
    o_ref[...] = out[:, :d].astype(o_ref.dtype)


# ---------------------------------------------------------------------------
# Jitted forward wrapper (takes pre-prepped weights; no per-call pad/cast/slice)
# ---------------------------------------------------------------------------

@functools.partial(jax.jit,
                   static_argnames=("block_m", "out_dtype", "single_buffer_weights"))
def ff_baseline_forward(x, w1s, w2p, w3p, *, block_m=512, out_dtype=None,
                        single_buffer_weights=False):
    """FF_baseline: leaky(leaky(leaky(x@w1)@w2)@w3) + x@ws  (all Linear bias=False)."""
    b, d = x.shape
    dp = w2p.shape[0]
    assert w1s.shape == (d, 2 * dp), (w1s.shape, d, dp)
    assert w3p.shape == (dp, dp), (w3p.shape, dp)
    odt = jnp.dtype(out_dtype) if out_dtype is not None else x.dtype

    # Adaptive batch tile: waste (grid*tm - b) stays under 8 rows; split into
    # >=2 tiles once B is big enough so both v7x TensorCores get work.
    n_tiles = pl.cdiv(b, block_m)
    if b >= 256:
        n_tiles = max(n_tiles, 2)
    if n_tiles <= 1:
        tm = b                                   # full-dim block (legal for any b)
    else:
        tm = _round_up(pl.cdiv(b, n_tiles), 8)
    grid = (pl.cdiv(b, tm),)

    # VMEM budget: double-buffered x/out tiles + (resident) weights + intermediates.
    lanes = _round_up(d, 128)
    wbuf = 1 if single_buffer_weights else 2
    w_bytes = (_round_up(d, 8) * 2 * dp + 2 * dp * dp) * w1s.dtype.itemsize
    vmem_need = (
        2 * tm * lanes * x.dtype.itemsize        # input tile (double-buffered)
        + 2 * tm * lanes * odt.itemsize          # output tile (double-buffered)
        + wbuf * w_bytes                         # w1|ws, w2, w3 (VMEM-resident)
        + 6 * tm * dp * 4                        # live f32 intermediates
    )
    try:
        vmem_cap = int(getattr(pltpu.get_tpu_info(), "vmem_capacity_bytes", 64 << 20))
    except Exception:
        vmem_cap = 64 << 20
    budget = (vmem_cap * 3) // 4   # headroom for compiler scratch (~48MiB v7x, ~96MiB v5e/v6e)
    vmem_limit = int(min(max(2 * vmem_need, 8 << 20), budget))

    def w_spec(shape):
        # Constant index_map -> weights stay VMEM-resident across batch tiles.
        if single_buffer_weights:
            # Only worthwhile for very large D on v7x (halves resident weight VMEM).
            return pl.BlockSpec(shape, lambda i: (0, 0), pipeline_mode=pl.Buffered(1))
        return pl.BlockSpec(shape, lambda i: (0, 0))

    return pl.pallas_call(
        _ff_fused_kernel,
        grid=grid,
        in_specs=[
            pl.BlockSpec((tm, d), lambda i: (i, 0)),
            w_spec((d, 2 * dp)),
            w_spec((dp, dp)),
            w_spec((dp, dp)),
        ],
        out_specs=pl.BlockSpec((tm, d), lambda i: (i, 0)),
        out_shape=jax.ShapeDtypeStruct((b, d), odt),
        compiler_params=pltpu.CompilerParams(
            dimension_semantics=("parallel",),   # batch tiles independent (v7x megacore)
            vmem_limit_bytes=vmem_limit,
        ),
    )(x, w1s, w2p, w3p)


# ---------------------------------------------------------------------------
# Pure-JAX references for correctness checking
# ---------------------------------------------------------------------------

def reference_forward_f32(x, w1, w2, w3, ws):
    h = _leaky_relu(x @ w1)
    h = _leaky_relu(h @ w2)
    h = _leaky_relu(h @ w3)
    return h + x @ ws


def reference_forward_mixed(x, w1, w2, w3, ws):
    """Same precision policy as the kernel: bf16 MXU operands, f32 accumulation."""
    bf = jnp.bfloat16
    xb = x.astype(bf)
    h = _leaky_relu(jnp.dot(xb, w1.astype(bf), preferred_element_type=jnp.float32))
    h = _leaky_relu(jnp.dot(h.astype(bf), w2.astype(bf), preferred_element_type=jnp.float32))
    h = _leaky_relu(jnp.dot(h.astype(bf), w3.astype(bf), preferred_element_type=jnp.float32))
    return h + jnp.dot(xb, ws.astype(bf), preferred_element_type=jnp.float32)


# ---------------------------------------------------------------------------
# Main
# ---------------------------------------------------------------------------

if __name__ == "__main__":
    key = jax.random.PRNGKey(0)
    kx, k1, k2, k3, ks = jax.random.split(key, 5)

    # FF_baseline(input_dim=96) applied to a small batch of pooled graph embeddings
    # (96 = hidden_dim 32 x 3 GIN layers, as in the surrounding model).
    B, D = 6, 96
    bound = (6.0 / (D + D)) ** 0.5  # xavier_uniform, matching init_emb in the source model

    x = jax.random.normal(kx, (B, D), jnp.float32)
    w1 = jax.random.uniform(k1, (D, D), jnp.float32, -bound, bound)
    w2 = jax.random.uniform(k2, (D, D), jnp.float32, -bound, bound)
    w3 = jax.random.uniform(k3, (D, D), jnp.float32, -bound, bound)
    ws = jax.random.uniform(ks, (D, D), jnp.float32, -bound, bound)

    # One-time weight prep (hoisted out of the per-call forward; reuse across calls).
    w1s, w2p, w3p = jax.block_until_ready(prepare_weights(w1, w2, w3, ws))

    out = ff_baseline_forward(x, w1s, w2p, w3p)
    out = jax.block_until_ready(out)
    assert out.shape == (B, D), out.shape
    assert out.dtype == x.dtype, out.dtype

    # Tight check against a reference with identical mixed precision.
    ref_mixed = reference_forward_mixed(x, w1, w2, w3, ws)
    assert jnp.allclose(out, ref_mixed, rtol=2e-3, atol=2e-3), (
        float(jnp.max(jnp.abs(out - ref_mixed)))
    )
    # Looser check against exact-f32 PyTorch math (kernel uses bf16 MXU operands).
    ref_f32 = reference_forward_f32(x, w1, w2, w3, ws)
    assert jnp.allclose(out, ref_f32, rtol=5e-2, atol=5e-2), (
        float(jnp.max(jnp.abs(out - ref_f32)))
    )

    print("KERNEL_OK")
</pallas_src>

<mosaic_0001>
module attributes {stable_mosaic.version = 11 : i64} {
  func.func @_ff_fused_kernel(%arg0: i32, %arg1: memref<6x96xf32, #tpu.memory_space<vmem>>, %arg2: memref<96x256xbf16, #tpu.memory_space<vmem>>, %arg3: memref<128x128xbf16, #tpu.memory_space<vmem>>, %arg4: memref<128x128xbf16, #tpu.memory_space<vmem>>, %arg5: memref<6x96xf32, #tpu.memory_space<vmem>>) attributes {dimension_semantics = [#tpu.dimension_semantics<parallel>], iteration_bounds = array<i64: 1>, scalar_prefetch = 0 : i64, scratch_operands = 0 : i64, tpu.core_type = #tpu.core_type<tc>, window_params = [{transform_indices = @transform_0, window_bounds = array<i64: 6, 96>}, {pipeline_mode = #tpu.pipeline_mode<synchronous>, transform_indices = @transform_1, window_bounds = array<i64: 96, 256>}, {pipeline_mode = #tpu.pipeline_mode<synchronous>, transform_indices = @transform_2, window_bounds = array<i64: 128, 128>}, {pipeline_mode = #tpu.pipeline_mode<synchronous>, transform_indices = @transform_3, window_bounds = array<i64: 128, 128>}, {transform_indices = @transform_4, window_bounds = array<i64: 6, 96>}]} {
    %c0 = arith.constant 0 : index
    %c0_0 = arith.constant 0 : index
    %0 = vector.load %arg1[%c0, %c0_0] : memref<6x96xf32, #tpu.memory_space<vmem>>, vector<6x96xf32>
    %1 = arith.truncf %0 : vector<6x96xf32> to vector<6x96xbf16>
    %c0_1 = arith.constant 0 : index
    %c0_2 = arith.constant 0 : index
    %2 = vector.load %arg2[%c0_1, %c0_2] : memref<96x256xbf16, #tpu.memory_space<vmem>>, vector<96x256xbf16>
    %cst = arith.constant dense<0.000000e+00> : vector<6x256xf32>
    %3 = tpu.matmul %1, %2, %cst {dimension_numbers = #tpu.dot_dimension_numbers<[1], [0], [0], [1], [0, 0, 1, 1], [], []>} : vector<6x96xbf16>, vector<96x256xbf16>, vector<6x256xf32> -> vector<6x256xf32>
    %4 = vector.extract_strided_slice %3 {offsets = [0, 0], sizes = [6, 128], strides = [1, 1]} : vector<6x256xf32> to vector<6x128xf32>
    %cst_3 = arith.constant 0.000000e+00 : f32
    %5 = vector.broadcast %cst_3 : f32 to vector<6x128xf32>
    %6 = arith.cmpf ogt, %4, %5 : vector<6x128xf32>
    %cst_4 = arith.constant 0.00999999977 : f32
    %7 = vector.broadcast %cst_4 : f32 to vector<6x128xf32>
    %8 = arith.mulf %7, %4 : vector<6x128xf32>
    %9 = arith.select %6, %4, %8 : vector<6x128xi1>, vector<6x128xf32>
    %10 = vector.extract_strided_slice %3 {offsets = [0, 128], sizes = [6, 128], strides = [1, 1]} : vector<6x256xf32> to vector<6x128xf32>
    %11 = arith.truncf %9 : vector<6x128xf32> to vector<6x128xbf16>
    %c0_5 = arith.constant 0 : index
    %c0_6 = arith.constant 0 : index
    %12 = vector.load %arg3[%c0_5, %c0_6] : memref<128x128xbf16, #tpu.memory_space<vmem>>, vector<128x128xbf16>
    %cst_7 = arith.constant dense<0.000000e+00> : vector<6x128xf32>
    %13 = tpu.matmul %11, %12, %cst_7 {dimension_numbers = #tpu.dot_dimension_numbers<[1], [0], [0], [1], [0, 0, 1, 1], [], []>} : vector<6x128xbf16>, vector<128x128xbf16>, vector<6x128xf32> -> vector<6x128xf32>
    %cst_8 = arith.constant 0.000000e+00 : f32
    %14 = vector.broadcast %cst_8 : f32 to vector<6x128xf32>
    %15 = arith.cmpf ogt, %13, %14 : vector<6x128xf32>
    %cst_9 = arith.constant 0.00999999977 : f32
    %16 = vector.broadcast %cst_9 : f32 to vector<6x128xf32>
    %17 = arith.mulf %16, %13 : vector<6x128xf32>
    %18 = arith.select %15, %13, %17 : vector<6x128xi1>, vector<6x128xf32>
    %19 = arith.truncf %18 : vector<6x128xf32> to vector<6x128xbf16>
    %c0_10 = arith.constant 0 : index
    %c0_11 = arith.constant 0 : index
    %20 = vector.load %arg4[%c0_10, %c0_11] : memref<128x128xbf16, #tpu.memory_space<vmem>>, vector<128x128xbf16>
    %cst_12 = arith.constant dense<0.000000e+00> : vector<6x128xf32>
    %21 = tpu.matmul %19, %20, %cst_12 {dimension_numbers = #tpu.dot_dimension_numbers<[1], [0], [0], [1], [0, 0, 1, 1], [], []>} : vector<6x128xbf16>, vector<128x128xbf16>, vector<6x128xf32> -> vector<6x128xf32>
    %cst_13 = arith.constant 0.000000e+00 : f32
    %22 = vector.broadcast %cst_13 : f32 to vector<6x128xf32>
    %23 = arith.cmpf ogt, %21, %22 : vector<6x128xf32>
    %cst_14 = arith.constant 0.00999999977 : f32
    %24 = vector.broadcast %cst_14 : f32 to vector<6x128xf32>
    %25 = arith.mulf %24, %21 : vector<6x128xf32>
    %26 = arith.select %23, %21, %25 : vector<6x128xi1>, vector<6x128xf32>
    %27 = arith.addf %26, %10 : vector<6x128xf32>
    %28 = vector.extract_strided_slice %27 {offsets = [0, 0], sizes = [6, 96], strides = [1, 1]} : vector<6x128xf32> to vector<6x96xf32>
    %c0_15 = arith.constant 0 : index
    %c0_16 = arith.constant 0 : index
    %29 = vector.load %arg5[%c0_15, %c0_16] : memref<6x96xf32, #tpu.memory_space<vmem>>, vector<6x96xf32>
    tpu.vector_store %arg5[%c0_15, %c0_16], %28 {strides = array<i32>} : memref<6x96xf32, #tpu.memory_space<vmem>>, vector<6x96xf32>,
    return
  }
  func.func @transform_0(%arg0: i32) -> (i32, i32) {
    %c0_i32 = arith.constant 0 : i32
    %c0_i32_0 = arith.constant 0 : i32
    return %arg0, %c0_i32 : i32, i32
  }
  func.func @transform_1(%arg0: i32) -> (i32, i32) {
    %c0_i32 = arith.constant 0 : i32
    %c0_i32_0 = arith.constant 0 : i32
    %c0_i32_1 = arith.constant 0 : i32
    return %c0_i32, %c0_i32_0 : i32, i32
  }
  func.func @transform_2(%arg0: i32) -> (i32, i32) {
    %c0_i32 = arith.constant 0 : i32
    %c0_i32_0 = arith.constant 0 : i32
    %c0_i32_1 = arith.constant 0 : i32
    return %c0_i32, %c0_i32_0 : i32, i32
  }
  func.func @transform_3(%arg0: i32) -> (i32, i32) {
    %c0_i32 = arith.constant 0 : i32
    %c0_i32_0 = arith.constant 0 : i32
    %c0_i32_1 = arith.constant 0 : i32
    return %c0_i32, %c0_i32_0 : i32, i32
  }
  func.func @transform_4(%arg0: i32) -> (i32, i32) {
    %c0_i32 = arith.constant 0 : i32
    %c0_i32_0 = arith.constant 0 : i32
    return %arg0, %c0_i32 : i32, i32
  }
}

</mosaic_0001>

<llo_original>
// kernel: ff_baseline_forward.1
$region0: #{ff_baseline_forward.1}
  #allocation0 [shape = 'u32[]', space=smem, size = 0x4, offset = 0x4, fixed_abs, tag = 'smem constant byte address 0x4 - core index']
  #allocation1 [shape = 'u32[144,128]{1,0:T(1,128)}', space=vmem, size = 0x12000, scoped, tag = 'internal scratch']
  %s0 = inlined_call_operand.hbm [shape: f32[6,96], index: 0, kind: input, shape index: {}]
  %s1 = inlined_call_operand.hbm [shape: bf16[96,256], index: 1, kind: input, shape index: {}]
  %s2 = inlined_call_operand.hbm [shape: bf16[128,128], index: 2, kind: input, shape index: {}]
  %s3 = inlined_call_operand.hbm [shape: bf16[128,128], index: 3, kind: input, shape index: {}]
  %s4 = inlined_call_operand.hbm [shape: f32[6,96], index: 4, kind: output, shape index: {}]
  %s5 = sld [smem:[#allocation0]]
  $region42: #{ff_baseline_forward.1} parent=0
    _
  %s7 = ssub.s32 1, %s5
  %s8 = scalar_select 0, %s7, %s5
  $region1: #{ff_baseline_forward.1} parent=0
    #allocation2 [shape = 'u8[4096]{0}', space=vmem, size = 0x1000, scoped, tag = 'input window, operand 0, single buffered']
    #allocation3 [shape = 's32[1]{0}', space=sflag, size = 0x4, scoped, tag = 'scoped memory for ff_baseline_forward.1']
    #allocation4 [shape = 's32[1]{0}', space=sflag, size = 0x4, scoped, tag = 'scoped memory for ff_baseline_forward.1']
    #allocation5 [shape = 'u8[49152]{0}', space=vmem, size = 0xc000, scoped, tag = 'input window, operand 1, single buffered']
    #allocation6 [shape = 's32[1]{0}', space=sflag, size = 0x4, scoped, tag = 'scoped memory for ff_baseline_forward.1']
    #allocation7 [shape = 'u8[32768]{0}', space=vmem, size = 0x8000, scoped, tag = 'input window, operand 2, single buffered']
    #allocation8 [shape = 'u8[32768]{0}', space=vmem, size = 0x8000, scoped, tag = 'input window, operand 3, single buffered']
    #allocation9 [shape = 's32[1]{0}', space=sflag, size = 0x4, scoped, tag = 'scoped memory for ff_baseline_forward.1']
    #allocation10 [shape = 'u8[4096]{0}', space=vmem, size = 0x1000, scoped, tag = 'output window, operand 0, single buffered']
    %9 = vsyncpa [#allocation3], 0
    %10 = vsyncpa [#allocation6], 0
    %11 = vsyncpa [#allocation9], 0
    %12 = vsyncpa [#allocation4], 0
    // Predicated region
    $region2: #{ff_baseline_forward.1} parent=1 // pred_check
      _
    $region3: #{ff_baseline_forward.1} parent=1 // pred_check_branch
      %14 = sbr.rel (0) target = $region5
    $region4: #{ff_baseline_forward.1} parent=1 // pred_region
      %s16 = ssub.s32 128, 128
      %17 = vsyncadd [#allocation3], %s16
      %s19 = sshll.u32 [#allocation2], 4
      %s20 = int_to_ptr.vmem [resolvable:$true] %s19
      %22 = dma.hbm_to_vmem [thread:$0]  %s0, 128, %s20, [#allocation3]
    $region5: #{ff_baseline_forward.1} parent=1 // pred_fallthru
      _
    // Predicated region
    $region6: #{ff_baseline_forward.1} parent=1 // pred_check
      _
    $region7: #{ff_baseline_forward.1} parent=1 // pred_check_branch
      %24 = sbr.rel (0) target = $region9
    $region8: #{ff_baseline_forward.1} parent=1 // pred_region
      %s26 = ssub.s32 1536, 1536
      %27 = vsyncadd [#allocation6], %s26
      %s28 = sshll.u32 [#allocation5], 4
      %s29 = int_to_ptr.vmem [resolvable:$true] %s28
      %34 = dma.hbm_to_vmem [thread:$0]  %s1, 1536, %s29, [#allocation6], 128, 128, 8
    $region9: #{ff_baseline_forward.1} parent=1 // pred_fallthru
      _
    // Predicated region
    $region10: #{ff_baseline_forward.1} parent=1 // pred_check
      _
    $region11: #{ff_baseline_forward.1} parent=1 // pred_check_branch
      %36 = sbr.rel (0) target = $region13
    $region12: #{ff_baseline_forward.1} parent=1 // pred_region
      %s38 = ssub.s32 1024, 1024
      %39 = vsyncadd [#allocation6], %s38
      %s40 = sshll.u32 [#allocation7], 4
      %s41 = int_to_ptr.vmem [resolvable:$true] %s40
      %46 = dma.hbm_to_vmem [thread:$0]  %s2, 1024, %s41, [#allocation6], 64, 64, 4
    $region13: #{ff_baseline_forward.1} parent=1 // pred_fallthru
      _
    // Predicated region
    $region14: #{ff_baseline_forward.1} parent=1 // pred_check
      _
    $region15: #{ff_baseline_forward.1} parent=1 // pred_check_branch
      %48 = sbr.rel (0) target = $region17
    $region16: #{ff_baseline_forward.1} parent=1 // pred_region
      %s50 = ssub.s32 1024, 1024
      %51 = vsyncadd [#allocation9], %s50
      %s52 = sshll.u32 [#allocation8], 4
      %s53 = int_to_ptr.vmem [resolvable:$true] %s52
      %58 = dma.hbm_to_vmem [thread:$0]  %s3, 1024, %s53, [#allocation9], 64, 64, 4
    $region17: #{ff_baseline_forward.1} parent=1 // pred_fallthru
      _
    // Predicated region
    $region18: #{ff_baseline_forward.1} parent=1 // pred_check
      _
    $region19: #{ff_baseline_forward.1} parent=1 // pred_check_branch
      %60 = sbr.rel (0) target = $region21
    $region20: #{ff_baseline_forward.1} parent=1 // pred_region
      %61 = dma.done [#allocation3], 128
    $region21: #{ff_baseline_forward.1} parent=1 // pred_fallthru
      _
    // Predicated region
    $region22: #{ff_baseline_forward.1} parent=1 // pred_check
      _
    $region23: #{ff_baseline_forward.1} parent=1 // pred_check_branch
      %63 = sbr.rel (0) target = $region25
    $region24: #{ff_baseline_forward.1} parent=1 // pred_region
      %64 = dma.done [#allocation6], 1536
    $region25: #{ff_baseline_forward.1} parent=1 // pred_fallthru
      _
    // Predicated region
    $region26: #{ff_baseline_forward.1} parent=1 // pred_check
      _
    $region27: #{ff_baseline_forward.1} parent=1 // pred_check_branch
      %66 = sbr.rel (0) target = $region29
    $region28: #{ff_baseline_forward.1} parent=1 // pred_region
      %67 = dma.done [#allocation6], 1024
    $region29: #{ff_baseline_forward.1} parent=1 // pred_fallthru
      _
    // Predicated region
    $region30: #{ff_baseline_forward.1} parent=1 // pred_check
      _
    $region31: #{ff_baseline_forward.1} parent=1 // pred_check_branch
      %69 = sbr.rel (0) target = $region33
    $region32: #{ff_baseline_forward.1} parent=1 // pred_region
      %70 = dma.done [#allocation9], 1024
    $region33: #{ff_baseline_forward.1} parent=1 // pred_fallthru
      _
    %v72 = vld [vmem:[#allocation2] sm:$0x3f]
    %v73 = vpack.c.bf16 %v72, %v72
    %v74 = vld [vmem:[#allocation5] sm:$0xff]
    %v75 = vld [vmem:[#allocation5 + $0x8] sm:$0xff]
    %v76 = vld [vmem:[#allocation5 + $0x10] sm:$0xff]
    %v77 = vld [vmem:[#allocation5 + $0x18] sm:$0xff]
    %v78 = vld [vmem:[#allocation5 + $0x20] sm:$0xff]
    %v79 = vld [vmem:[#allocation5 + $0x28] sm:$0xff]
    %v80 = vld [vmem:[#allocation5 + $0x30] sm:$0xff]
    %v81 = vld [vmem:[#allocation5 + $0x38] sm:$0xff]
    %v82 = vld [vmem:[#allocation5 + $0x40] sm:$0xff]
    %v83 = vld [vmem:[#allocation5 + $0x48] sm:$0xff]
    %v84 = vld [vmem:[#allocation5 + $0x50] sm:$0xff]
    %v85 = vld [vmem:[#allocation5 + $0x58] sm:$0xff]
    %v98 = vunpack.c.l.b16 %v74
    %v99 = vunpack.c.h.b16 %v74
    %v100 = vunpack.c.l.b16 %v75
    %v101 = vunpack.c.h.b16 %v75
    %v102 = vunpack.c.l.b16 %v76
    %v103 = vunpack.c.h.b16 %v76
    %v104 = vunpack.c.l.b16 %v77
    %v105 = vunpack.c.h.b16 %v77
    %v106 = vunpack.c.l.b16 %v78
    %v107 = vunpack.c.h.b16 %v78
    %v108 = vunpack.c.l.b16 %v79
    %v109 = vunpack.c.h.b16 %v79
    %v110 = vunpack.c.l.b16 %v80
    %v111 = vunpack.c.h.b16 %v80
    %v112 = vunpack.c.l.b16 %v81
    %v113 = vunpack.c.h.b16 %v81
    %v114 = vunpack.c.l.b16 %v82
    %v115 = vunpack.c.h.b16 %v82
    %v116 = vunpack.c.l.b16 %v83
    %v117 = vunpack.c.h.b16 %v83
    %v118 = vunpack.c.l.b16 %v84
    %v119 = vunpack.c.h.b16 %v84
    %v120 = vunpack.c.l.b16 %v85
    %v121 = vunpack.c.h.b16 %v85
    %v122 = vpack.c.b16 %v100, %v98
    %v123 = vpack.c.b16 %v101, %v99
    %v124 = vpack.c.b16 %v104, %v102
    %v125 = vpack.c.b16 %v105, %v103
    %v126 = vpack.c.b16 %v108, %v106
    %v127 = vpack.c.b16 %v109, %v107
    %v128 = vpack.c.b16 %v112, %v110
    %v129 = vpack.c.b16 %v113, %v111
    %v130 = vpack.c.b16 %v116, %v114
    %v131 = vpack.c.b16 %v117, %v115
    %v132 = vpack.c.b16 %v120, %v118
    %v133 = vpack.c.b16 %v121, %v119
    %vm146 = vcmask 785408
    %v148 = vsel %vm146, %v73, 0
    %150 = vmatprep.subr.bf16.mxu0 %v123
    %151 = vmatpush1.bf16.msra.mxu0 %v122
    %152 = vmatprep.subr.bf16.mxu0 %v125
    %153 = vmatpush1.bf16.msra.mxu0 %v124
    %154 = vmatprep.subr.bf16.mxu0 %v127
    %155 = vmatpush1.bf16.msra.mxu0 %v126
    %156 = vmatprep.subr.bf16.mxu0 %v129
    %157 = vmatpush1.bf16.msra.mxu0 %v128
    %158 = vmatprep.subr.bf16.mxu0 %v131
    %159 = vmatpush1.bf16.msra.mxu0 %v130
    %160 = vmatprep.subr.bf16.mxu0 %v133
    %161 = vmatpush1.bf16.msra.mxu0 %v132
    %162 = vmatprep.subr.bf16.mxu0 0
    %163 = vmatpush1.bf16.msra.mxu0 0
    %164 = vmatprep.subr.bf16.mxu0 0
    %165 = vmatpush1.bf16.msra.mxu0 0
    %166 = vmatprep.subr.bf16.mxu0 0
    %167 = vmatpush1.bf16.msra.mxu0 0
    %168 = vmatprep.subr.bf16.mxu0 0
    %169 = vmatpush1.bf16.msra.mxu0 0
    %170 = vmatprep.subr.bf16.mxu0 0
    %171 = vmatpush1.bf16.msra.mxu0 0
    %172 = vmatprep.subr.bf16.mxu0 0
    %173 = vmatpush1.bf16.msra.mxu0 0
    %174 = vmatprep.subr.bf16.mxu0 0
    %175 = vmatpush1.bf16.msra.mxu0 0
    %176 = vmatprep.subr.bf16.mxu0 0
    %177 = vmatpush1.bf16.msra.mxu0 0
    %178 = vmatprep.subr.bf16.mxu0 0
    %179 = vmatpush1.bf16.msra.mxu0 0
    %180 = vmatprep.subr.bf16.mxu0 0
    %181 = vmatpush1.bf16.msra.mxu0 0
    %182 = vmatprep.mubr.bf16.mxu0 0
    %183 = vmatmul.mubr.bf16.gmra.mrb[0].mxu0 %v148
    %v184 = vpop.f32.mrb[0].mxu0
    %v185 = vadd.f32 0.0, %v184
    %v186 = vpop.f32.mrb[0].mxu0
    %v187 = vadd.f32 0.0, %v186
    %v188 = vpop.f32.mrb[0].mxu0
    %v189 = vpop.f32.mrb[0].mxu0
    %190 = vdwg.mxu0
    %vm191 = vcmp.gt.f32.partialorder %v185, 0.0
    %v192 = vmul.f32 %v185, 0.01
    %v193 = vsel %vm191, %v185, %v192
    %v194 = vpack.c.bf16 %v193, %v193
    %v195 = vld [vmem:[#allocation7] sm:$0xf]
    %v196 = vld [vmem:[#allocation7 + $0x4] sm:$0xf]
    %v197 = vld [vmem:[#allocation7 + $0x8] sm:$0xf]
    %v198 = vld [vmem:[#allocation7 + $0xc] sm:$0xf]
    %v199 = vld [vmem:[#allocation7 + $0x10] sm:$0xf]
    %v200 = vld [vmem:[#allocation7 + $0x14] sm:$0xf]
    %v201 = vld [vmem:[#allocation7 + $0x18] sm:$0xf]
    %v202 = vld [vmem:[#allocation7 + $0x1c] sm:$0xf]
    %v203 = vld [vmem:[#allocation7 + $0x20] sm:$0xf]
    %v204 = vld [vmem:[#allocation7 + $0x24] sm:$0xf]
    %v205 = vld [vmem:[#allocation7 + $0x28] sm:$0xf]
    %v206 = vld [vmem:[#allocation7 + $0x2c] sm:$0xf]
    %v207 = vld [vmem:[#allocation7 + $0x30] sm:$0xf]
    %v208 = vld [vmem:[#allocation7 + $0x34] sm:$0xf]
    %v209 = vld [vmem:[#allocation7 + $0x38] sm:$0xf]
    %v210 = vld [vmem:[#allocation7 + $0x3c] sm:$0xf]
    %v227 = vunpack.c.l.b16 %v195
    %v228 = vunpack.c.l.b16 %v196
    %v229 = vunpack.c.l.b16 %v197
    %v230 = vunpack.c.l.b16 %v198
    %v231 = vunpack.c.l.b16 %v199
    %v232 = vunpack.c.l.b16 %v200
    %v233 = vunpack.c.l.b16 %v201
    %v234 = vunpack.c.l.b16 %v202
    %v235 = vunpack.c.l.b16 %v203
    %v236 = vunpack.c.l.b16 %v204
    %v237 = vunpack.c.l.b16 %v205
    %v238 = vunpack.c.l.b16 %v206
    %v239 = vunpack.c.l.b16 %v207
    %v240 = vunpack.c.l.b16 %v208
    %v241 = vunpack.c.l.b16 %v209
    %v242 = vunpack.c.l.b16 %v210
    %v243 = vpack.c.b16 %v228, %v227
    %v244 = vpack.c.b16 %v230, %v229
    %v245 = vpack.c.b16 %v232, %v231
    %v246 = vpack.c.b16 %v234, %v233
    %v247 = vpack.c.b16 %v236, %v235
    %v248 = vpack.c.b16 %v238, %v237
    %v249 = vpack.c.b16 %v240, %v239
    %v250 = vpack.c.b16 %v242, %v241
    %259 = vmatprep.subr.bf16.mxu0 0
    %260 = vmatpush1.bf16.msra.mxu0 %v243
    %261 = vmatprep.subr.bf16.mxu0 0
    %262 = vmatpush1.bf16.msra.mxu0 %v244
    %263 = vmatprep.subr.bf16.mxu0 0
    %264 = vmatpush1.bf16.msra.mxu0 %v245
    %265 = vmatprep.subr.bf16.mxu0 0
    %266 = vmatpush1.bf16.msra.mxu0 %v246
    %267 = vmatprep.subr.bf16.mxu0 0
    %268 = vmatpush1.bf16.msra.mxu0 %v247
    %269 = vmatprep.subr.bf16.mxu0 0
    %270 = vmatpush1.bf16.msra.mxu0 %v248
    %271 = vmatprep.subr.bf16.mxu0 0
    %272 = vmatpush1.bf16.msra.mxu0 %v249
    %273 = vmatprep.subr.bf16.mxu0 0
    %274 = vmatpush1.bf16.msra.mxu0 %v250
    %275 = vmatprep.subr.bf16.mxu0 0
    %276 = vmatpush1.bf16.msra.mxu0 0
    %277 = vmatprep.subr.bf16.mxu0 0
    %278 = vmatpush1.bf16.msra.mxu0 0
    %279 = vmatprep.subr.bf16.mxu0 0
    %280 = vmatpush1.bf16.msra.mxu0 0
    %281 = vmatprep.subr.bf16.mxu0 0
    %282 = vmatpush1.bf16.msra.mxu0 0
    %283 = vmatprep.subr.bf16.mxu0 0
    %284 = vmatpush1.bf16.msra.mxu0 0
    %285 = vmatprep.subr.bf16.mxu0 0
    %286 = vmatpush1.bf16.msra.mxu0 0
    %287 = vmatprep.subr.bf16.mxu0 0
    %288 = vmatpush1.bf16.msra.mxu0 0
    %289 = vmatprep.subr.bf16.mxu0 0
    %290 = vmatpush1.bf16.msra.mxu0 0
    %291 = vmatprep.mubr.bf16.mxu0 0
    %292 = vmatmul.mubr.bf16.gmra.mrb[0].mxu0 %v194
    %v293 = vpop.f32.mrb[0].mxu0
    %v294 = vadd.f32 0.0, %v293
    %v295 = vpop.f32.mrb[0].mxu0
    %v296 = vpop.f32.mrb[0].mxu0
    %v297 = vpop.f32.mrb[0].mxu0
    %298 = vdwg.mxu0
    %vm299 = vcmp.gt.f32.partialorder %v294, 0.0
    %v300 = vmul.f32 %v294, 0.01
    %v301 = vsel %vm299, %v294, %v300
    %v302 = vpack.c.bf16 %v301, %v301
    %v303 = vld [vmem:[#allocation8] sm:$0xf]
    %v304 = vld [vmem:[#allocation8 + $0x4] sm:$0xf]
    %v305 = vld [vmem:[#allocation8 + $0x8] sm:$0xf]
    %v306 = vld [vmem:[#allocation8 + $0xc] sm:$0xf]
    %v307 = vld [vmem:[#allocation8 + $0x10] sm:$0xf]
    %v308 = vld [vmem:[#allocation8 + $0x14] sm:$0xf]
    %v309 = vld [vmem:[#allocation8 + $0x18] sm:$0xf]
    %v310 = vld [vmem:[#allocation8 + $0x1c] sm:$0xf]
    %v311 = vld [vmem:[#allocation8 + $0x20] sm:$0xf]
    %v312 = vld [vmem:[#allocation8 + $0x24] sm:$0xf]
    %v313 = vld [vmem:[#allocation8 + $0x28] sm:$0xf]
    %v314 = vld [vmem:[#allocation8 + $0x2c] sm:$0xf]
    %v315 = vld [vmem:[#allocation8 + $0x30] sm:$0xf]
    %v316 = vld [vmem:[#allocation8 + $0x34] sm:$0xf]
    %v317 = vld [vmem:[#allocation8 + $0x38] sm:$0xf]
    %v318 = vld [vmem:[#allocation8 + $0x3c] sm:$0xf]
    %v335 = vunpack.c.l.b16 %v303
    %v336 = vunpack.c.l.b16 %v304
    %v337 = vunpack.c.l.b16 %v305
    %v338 = vunpack.c.l.b16 %v306
    %v339 = vunpack.c.l.b16 %v307
    %v340 = vunpack.c.l.b16 %v308
    %v341 = vunpack.c.l.b16 %v309
    %v342 = vunpack.c.l.b16 %v310
    %v343 = vunpack.c.l.b16 %v311
    %v344 = vunpack.c.l.b16 %v312
    %v345 = vunpack.c.l.b16 %v313
    %v346 = vunpack.c.l.b16 %v314
    %v347 = vunpack.c.l.b16 %v315
    %v348 = vunpack.c.l.b16 %v316
    %v349 = vunpack.c.l.b16 %v317
    %v350 = vunpack.c.l.b16 %v318
    %v351 = vpack.c.b16 %v336, %v335
    %v352 = vpack.c.b16 %v338, %v337
    %v353 = vpack.c.b16 %v340, %v339
    %v354 = vpack.c.b16 %v342, %v341
    %v355 = vpack.c.b16 %v344, %v343
    %v356 = vpack.c.b16 %v346, %v345
    %v357 = vpack.c.b16 %v348, %v347
    %v358 = vpack.c.b16 %v350, %v349
    %367 = vmatprep.subr.bf16.mxu0 0
    %368 = vmatpush1.bf16.msra.mxu0 %v351
    %369 = vmatprep.subr.bf16.mxu0 0
    %370 = vmatpush1.bf16.msra.mxu0 %v352
    %371 = vmatprep.subr.bf16.mxu0 0
    %372 = vmatpush1.bf16.msra.mxu0 %v353
    %373 = vmatprep.subr.bf16.mxu0 0
    %374 = vmatpush1.bf16.msra.mxu0 %v354
    %375 = vmatprep.subr.bf16.mxu0 0
    %376 = vmatpush1.bf16.msra.mxu0 %v355
    %377 = vmatprep.subr.bf16.mxu0 0
    %378 = vmatpush1.bf16.msra.mxu0 %v356
    %379 = vmatprep.subr.bf16.mxu0 0
    %380 = vmatpush1.bf16.msra.mxu0 %v357
    %381 = vmatprep.subr.bf16.mxu0 0
    %382 = vmatpush1.bf16.msra.mxu0 %v358
    %383 = vmatprep.subr.bf16.mxu0 0
    %384 = vmatpush1.bf16.msra.mxu0 0
    %385 = vmatprep.subr.bf16.mxu0 0
    %386 = vmatpush1.bf16.msra.mxu0 0
    %387 = vmatprep.subr.bf16.mxu0 0
    %388 = vmatpush1.bf16.msra.mxu0 0
    %389 = vmatprep.subr.bf16.mxu0 0
    %390 = vmatpush1.bf16.msra.mxu0 0
    %391 = vmatprep.subr.bf16.mxu0 0
    %392 = vmatpush1.bf16.msra.mxu0 0
    %393 = vmatprep.subr.bf16.mxu0 0
    %394 = vmatpush1.bf16.msra.mxu0 0
    %395 = vmatprep.subr.bf16.mxu0 0
    %396 = vmatpush1.bf16.msra.mxu0 0
    %397 = vmatprep.subr.bf16.mxu0 0
    %398 = vmatpush1.bf16.msra.mxu0 0
    %399 = vmatprep.mubr.bf16.mxu0 0
    %400 = vmatmul.mubr.bf16.gmra.mrb[0].mxu0 %v302
    %v401 = vpop.f32.mrb[0].mxu0
    %v402 = vadd.f32 0.0, %v401
    %v403 = vpop.f32.mrb[0].mxu0
    %v404 = vpop.f32.mrb[0].mxu0
    %v405 = vpop.f32.mrb[0].mxu0
    %406 = vdwg.mxu0
    %vm407 = vcmp.gt.f32.partialorder %v402, 0.0
    %v408 = vmul.f32 %v402, 0.01
    %v409 = vsel %vm407, %v402, %v408
    %v410 = vadd.f32 %v409, %v187
    %vm411 = vcmask 783360
    %412 = vst.msk [vmem:[#allocation10] sm:$0x3f] %vm411, %v410
    // Predicated region
    $region34: #{ff_baseline_forward.1} parent=1 // pred_check
      _
    $region35: #{ff_baseline_forward.1} parent=1 // pred_check_branch
      %414 = sbr.rel (0) target = $region37
    $region36: #{ff_baseline_forward.1} parent=1 // pred_region
      %s416 = ssub.s32 128, 128
      %417 = vsyncadd [#allocation4], %s416
      %s419 = sshll.u32 [#allocation10], 4
      %s420 = int_to_ptr.vmem [resolvable:$true] %s419
      %422 = dma.vmem_to_hbm [thread:$0]  %s420, 128, %s4, [#allocation4]
    $region37: #{ff_baseline_forward.1} parent=1 // pred_fallthru
      _
    // Predicated region
    $region38: #{ff_baseline_forward.1} parent=1 // pred_check
      _
    $region39: #{ff_baseline_forward.1} parent=1 // pred_check_branch
      %424 = sbr.rel (0) target = $region41
    $region40: #{ff_baseline_forward.1} parent=1 // pred_region
      %425 = dma.done [#allocation4], 128
    $region41: #{ff_baseline_forward.1} parent=1 // pred_fallthru
      _
    %426 = vsyncpa [#allocation3], 1
    %427 = vsyncpa [#allocation6], 1
    %428 = vsyncpa [#allocation9], 1
    %429 = vsyncpa [#allocation4], 1

</llo_original>
